<compile_context>
chip_gen: v7x
topology: tpu7x:2x2x1
jax: 0.10.0
libtpu: 0.0.40
codegen_flags: <defaults>
</compile_context>

<pallas_src>
import math

import jax
import jax.numpy as jnp
from jax.experimental import pallas as pl
from jax.experimental.pallas import tpu as pltpu


def _round_up(x, m):
    return (x + m - 1) // m * m


def _reduce_kernel(h_ref, c_ref, wh_ref, bh_ref, wc_ref, bc_ref, oh_ref, oc_ref):
    # h_ref/c_ref : (tile_m, 2H)   w*_ref : (2H, Np)   b*_ref : (1, Np)
    # o*_ref      : (tile_m, Np)
    yh = jnp.dot(h_ref[...], wh_ref[...], preferred_element_type=jnp.float32)
    yh = yh + bh_ref[...]
    oh_ref[...] = jnp.maximum(yh, 0.0).astype(oh_ref.dtype)

    yc = jnp.dot(c_ref[...], wc_ref[...], preferred_element_type=jnp.float32)
    yc = yc + bc_ref[...]
    oc_ref[...] = jnp.maximum(yc, 0.0).astype(oc_ref.dtype)
    # TODO(synk): dropout is identity in eval mode; a training-mode variant
    # would use pltpu.prng_seed + pltpu.stateful_bernoulli before the ReLU.


def reduce_forward(h2, c2, w_h, b_h, w_c, b_c, *, tile_m=None):
    """h2, c2: (rows, K) f32; w_*: (K, Np) f32; b_*: (1, Np) f32 -> two (rows, Np).

    Np is a multiple of 128 (lane-dense stores); K equals the full contraction
    dim, so all BlockSpec shapes satisfy the (8, 128) tiling rules.
    """
    rows, k = h2.shape
    n = w_h.shape[1]
    if tile_m is None:
        tile_m = rows if rows <= 512 else 512
    grid_m = pl.cdiv(rows, tile_m)

    cost = pl.CostEstimate(
        flops=2 * 2 * rows * k * n,  # two matmuls
        transcendentals=0,
        bytes_accessed=4 * (2 * rows * k + 2 * k * n + 2 * n + 2 * rows * n),
    )

    row_spec = pl.BlockSpec((tile_m, k), lambda i: (i, 0))   # row tiles stream in
    w_spec = pl.BlockSpec((k, n), lambda i: (0, 0))          # weights stay resident
    b_spec = pl.BlockSpec((1, n), lambda i: (0, 0))          # biases stay resident
    out_spec = pl.BlockSpec((tile_m, n), lambda i: (i, 0))

    return pl.pallas_call(
        _reduce_kernel,
        out_shape=(
            jax.ShapeDtypeStruct((rows, n), h2.dtype),
            jax.ShapeDtypeStruct((rows, n), c2.dtype),
        ),
        grid=(grid_m,),
        in_specs=[row_spec, row_spec, w_spec, b_spec, w_spec, b_spec],
        out_specs=(out_spec, out_spec),
        compiler_params=pltpu.CompilerParams(
            dimension_semantics=("parallel",),  # row axis shards across v7x TCs
        ),
        cost_estimate=cost,
    )(h2, c2, w_h, b_h, w_c, b_c)


class ReducePallas:
    """JAX/Pallas counterpart of the PyTorch `Reduce` module (eval mode)."""

    def __init__(self, hidden_dim, key):
        self.hidden_dim = hidden_dim
        H = hidden_dim
        fan_in = 2 * H
        bound = 1.0 / math.sqrt(fan_in)
        k1, k2, k3, k4 = jax.random.split(key, 4)
        # PyTorch Linear stores weight as (out, in); keep the transposed
        # (in, out) layout so the kernel computes x @ W directly.
        self.w_h = jax.random.uniform(k1, (fan_in, H), jnp.float32, -bound, bound)
        self.b_h = jax.random.uniform(k2, (H,), jnp.float32, -bound, bound)
        self.w_c = jax.random.uniform(k3, (fan_in, H), jnp.float32, -bound, bound)
        self.b_c = jax.random.uniform(k4, (H,), jnp.float32, -bound, bound)

        # Lane-dense padded parameter copies (built once; free at call time).
        self.n_pad = _round_up(H, 128)
        if self.n_pad == H:
            self.w_h_p = self.w_h
            self.w_c_p = self.w_c
            self.b_h_p = self.b_h.reshape(1, H)
            self.b_c_p = self.b_c.reshape(1, H)
        else:
            pad = self.n_pad - H
            self.w_h_p = jnp.pad(self.w_h, ((0, 0), (0, pad)))
            self.w_c_p = jnp.pad(self.w_c, ((0, 0), (0, pad)))
            self.b_h_p = jnp.pad(self.b_h, (0, pad)).reshape(1, self.n_pad)
            self.b_c_p = jnp.pad(self.b_c, (0, pad)).reshape(1, self.n_pad)

    def __call__(self, h, c):
        H = self.hidden_dim
        assert H == h.shape[2]
        assert H == c.shape[2]
        # torch .reshape(-1, 2H) on the contiguous (dirs, B, H) tensor ==
        # row-major jnp.reshape (no direction transpose/concat).
        h2 = h.reshape(-1, 2 * H)
        c2 = c.reshape(-1, 2 * H)
        oh, oc = reduce_forward(
            h2, c2, self.w_h_p, self.b_h_p, self.w_c_p, self.b_c_p
        )
        if self.n_pad != H:
            oh = oh[:, :H]
            oc = oc[:, :H]
        return oh[None, ...], oc[None, ...]


if __name__ == "__main__":
    hidden_dim = 32
    batch = 8
    num_dirs = 2  # bidirectional LSTM final states: (2, batch, hidden)

    key = jax.random.PRNGKey(0)
    k_params, k_h, k_c = jax.random.split(key, 3)

    module = ReducePallas(hidden_dim, k_params)

    h = jax.random.normal(k_h, (num_dirs, batch, hidden_dim), jnp.float32)
    c = jax.random.normal(k_c, (num_dirs, batch, hidden_dim), jnp.float32)

    h_out, c_out = module(h, c)
    h_out = jax.block_until_ready(h_out)
    c_out = jax.block_until_ready(c_out)

    # Reference check in plain JAX (same math as the PyTorch module, eval-mode
    # dropout = identity, same row-major reshape as the spec).
    h2 = h.reshape(-1, hidden_dim * 2)
    c2 = c.reshape(-1, hidden_dim * 2)
    h_ref = jnp.maximum(h2 @ module.w_h + module.b_h, 0.0)[None, ...]
    c_ref = jnp.maximum(c2 @ module.w_c + module.b_c, 0.0)[None, ...]

    assert h_out.shape == (1, batch, hidden_dim)
    assert c_out.shape == (1, batch, hidden_dim)
    assert jnp.allclose(h_out, h_ref, atol=1e-5, rtol=1e-5)
    assert jnp.allclose(c_out, c_ref, atol=1e-5, rtol=1e-5)

    print("KERNEL_OK")
</pallas_src>

<mosaic_0001>
module attributes {stable_mosaic.version = 11 : i64} {
  func.func @_reduce_kernel(%arg0: i32, %arg1: memref<8x64xf32, #tpu.memory_space<vmem>>, %arg2: memref<8x64xf32, #tpu.memory_space<vmem>>, %arg3: memref<64x128xf32, #tpu.memory_space<vmem>>, %arg4: memref<1x128xf32, #tpu.memory_space<vmem>>, %arg5: memref<64x128xf32, #tpu.memory_space<vmem>>, %arg6: memref<1x128xf32, #tpu.memory_space<vmem>>, %arg7: memref<8x128xf32, #tpu.memory_space<vmem>>, %arg8: memref<8x128xf32, #tpu.memory_space<vmem>>) attributes {dimension_semantics = [#tpu.dimension_semantics<parallel>], iteration_bounds = array<i64: 1>, scalar_prefetch = 0 : i64, scratch_operands = 0 : i64, tpu.core_type = #tpu.core_type<tc>, window_params = [{transform_indices = @transform_0, window_bounds = array<i64: 8, 64>}, {transform_indices = @transform_1, window_bounds = array<i64: 8, 64>}, {pipeline_mode = #tpu.pipeline_mode<synchronous>, transform_indices = @transform_2, window_bounds = array<i64: 64, 128>}, {pipeline_mode = #tpu.pipeline_mode<synchronous>, transform_indices = @transform_3, window_bounds = array<i64: 1, 128>}, {pipeline_mode = #tpu.pipeline_mode<synchronous>, transform_indices = @transform_4, window_bounds = array<i64: 64, 128>}, {pipeline_mode = #tpu.pipeline_mode<synchronous>, transform_indices = @transform_5, window_bounds = array<i64: 1, 128>}, {transform_indices = @transform_6, window_bounds = array<i64: 8, 128>}, {transform_indices = @transform_7, window_bounds = array<i64: 8, 128>}]} {
    %c0 = arith.constant 0 : index
    %c0_0 = arith.constant 0 : index
    %0 = vector.load %arg1[%c0, %c0_0] : memref<8x64xf32, #tpu.memory_space<vmem>>, vector<8x64xf32>
    %c0_1 = arith.constant 0 : index
    %c0_2 = arith.constant 0 : index
    %1 = vector.load %arg3[%c0_1, %c0_2] : memref<64x128xf32, #tpu.memory_space<vmem>>, vector<64x128xf32>
    %cst = arith.constant dense<0.000000e+00> : vector<8x128xf32>
    %2 = tpu.matmul %0, %1, %cst {dimension_numbers = #tpu.dot_dimension_numbers<[1], [0], [0], [1], [0, 0, 1, 1], [], []>} : vector<8x64xf32>, vector<64x128xf32>, vector<8x128xf32> -> vector<8x128xf32>
    %c0_3 = arith.constant 0 : index
    %c0_4 = arith.constant 0 : index
    %3 = vector.load %arg4[%c0_3, %c0_4] : memref<1x128xf32, #tpu.memory_space<vmem>>, vector<1x128xf32>
    %4 = vector.broadcast %3 : vector<1x128xf32> to vector<8x128xf32>
    %5 = arith.addf %2, %4 : vector<8x128xf32>
    %cst_5 = arith.constant 0.000000e+00 : f32
    %6 = vector.broadcast %cst_5 : f32 to vector<8x128xf32>
    %7 = arith.maximumf %5, %6 : vector<8x128xf32>
    %c0_6 = arith.constant 0 : index
    %c0_7 = arith.constant 0 : index
    %8 = vector.load %arg7[%c0_6, %c0_7] : memref<8x128xf32, #tpu.memory_space<vmem>>, vector<8x128xf32>
    tpu.vector_store %arg7[%c0_6, %c0_7], %7 {strides = array<i32>} : memref<8x128xf32, #tpu.memory_space<vmem>>, vector<8x128xf32>,
    %c0_8 = arith.constant 0 : index
    %c0_9 = arith.constant 0 : index
    %9 = vector.load %arg2[%c0_8, %c0_9] : memref<8x64xf32, #tpu.memory_space<vmem>>, vector<8x64xf32>
    %c0_10 = arith.constant 0 : index
    %c0_11 = arith.constant 0 : index
    %10 = vector.load %arg5[%c0_10, %c0_11] : memref<64x128xf32, #tpu.memory_space<vmem>>, vector<64x128xf32>
    %cst_12 = arith.constant dense<0.000000e+00> : vector<8x128xf32>
    %11 = tpu.matmul %9, %10, %cst_12 {dimension_numbers = #tpu.dot_dimension_numbers<[1], [0], [0], [1], [0, 0, 1, 1], [], []>} : vector<8x64xf32>, vector<64x128xf32>, vector<8x128xf32> -> vector<8x128xf32>
    %c0_13 = arith.constant 0 : index
    %c0_14 = arith.constant 0 : index
    %12 = vector.load %arg6[%c0_13, %c0_14] : memref<1x128xf32, #tpu.memory_space<vmem>>, vector<1x128xf32>
    %13 = vector.broadcast %12 : vector<1x128xf32> to vector<8x128xf32>
    %14 = arith.addf %11, %13 : vector<8x128xf32>
    %cst_15 = arith.constant 0.000000e+00 : f32
    %15 = vector.broadcast %cst_15 : f32 to vector<8x128xf32>
    %16 = arith.maximumf %14, %15 : vector<8x128xf32>
    %c0_16 = arith.constant 0 : index
    %c0_17 = arith.constant 0 : index
    %17 = vector.load %arg8[%c0_16, %c0_17] : memref<8x128xf32, #tpu.memory_space<vmem>>, vector<8x128xf32>
    tpu.vector_store %arg8[%c0_16, %c0_17], %16 {strides = array<i32>} : memref<8x128xf32, #tpu.memory_space<vmem>>, vector<8x128xf32>,
    return
  }
  func.func @transform_0(%arg0: i32) -> (i32, i32) {
    %c0_i32 = arith.constant 0 : i32
    %c0_i32_0 = arith.constant 0 : i32
    return %arg0, %c0_i32 : i32, i32
  }
  func.func @transform_1(%arg0: i32) -> (i32, i32) {
    %c0_i32 = arith.constant 0 : i32
    %c0_i32_0 = arith.constant 0 : i32
    return %arg0, %c0_i32 : i32, i32
  }
  func.func @transform_2(%arg0: i32) -> (i32, i32) {
    %c0_i32 = arith.constant 0 : i32
    %c0_i32_0 = arith.constant 0 : i32
    %c0_i32_1 = arith.constant 0 : i32
    return %c0_i32, %c0_i32_0 : i32, i32
  }
  func.func @transform_3(%arg0: i32) -> (i32, i32) {
    %c0_i32 = arith.constant 0 : i32
    %c0_i32_0 = arith.constant 0 : i32
    %c0_i32_1 = arith.constant 0 : i32
    return %c0_i32, %c0_i32_0 : i32, i32
  }
  func.func @transform_4(%arg0: i32) -> (i32, i32) {
    %c0_i32 = arith.constant 0 : i32
    %c0_i32_0 = arith.constant 0 : i32
    %c0_i32_1 = arith.constant 0 : i32
    return %c0_i32, %c0_i32_0 : i32, i32
  }
  func.func @transform_5(%arg0: i32) -> (i32, i32) {
    %c0_i32 = arith.constant 0 : i32
    %c0_i32_0 = arith.constant 0 : i32
    %c0_i32_1 = arith.constant 0 : i32
    return %c0_i32, %c0_i32_0 : i32, i32
  }
  func.func @transform_6(%arg0: i32) -> (i32, i32) {
    %c0_i32 = arith.constant 0 : i32
    %c0_i32_0 = arith.constant 0 : i32
    return %arg0, %c0_i32 : i32, i32
  }
  func.func @transform_7(%arg0: i32) -> (i32, i32) {
    %c0_i32 = arith.constant 0 : i32
    %c0_i32_0 = arith.constant 0 : i32
    return %arg0, %c0_i32 : i32, i32
  }
}

</mosaic_0001>

<llo_original>
// kernel: tpu_custom_call.1
$region0: #{tpu_custom_call.1}
  #allocation0 [shape = 'u32[]', space=smem, size = 0x4, offset = 0x4, fixed_abs, tag = 'smem constant byte address 0x4 - core index']
  #allocation1 [shape = 'u32[144,128]{1,0:T(1,128)}', space=vmem, size = 0x12000, scoped, tag = 'internal scratch']
  %s0 = inlined_call_operand.hbm [shape: f32[8,64], index: 0, kind: input, shape index: {}]
  %s1 = inlined_call_operand.hbm [shape: f32[8,64], index: 1, kind: input, shape index: {}]
  %s2 = inlined_call_operand.hbm [shape: f32[64,128], index: 2, kind: input, shape index: {}]
  %s3 = inlined_call_operand.vmem [shape: f32[1,128], index: 3, kind: input, shape index: {}]
  %s4 = inlined_call_operand.hbm [shape: f32[64,128], index: 4, kind: input, shape index: {}]
  %s5 = inlined_call_operand.vmem [shape: f32[1,128], index: 5, kind: input, shape index: {}]
  %s6 = inlined_call_operand.hbm [shape: f32[8,128], index: 6, kind: output, shape index: {0}]
  %s7 = inlined_call_operand.hbm [shape: f32[8,128], index: 7, kind: output, shape index: {1}]
  %8 = xla_tuple %s6, %s7
  %s9 = sld [smem:[#allocation0]]
  $region58: #{tpu_custom_call.1} parent=0
    _
  %s11 = ssub.s32 1, %s9
  %s12 = scalar_select 0, %s11, %s9
  $region1: #{tpu_custom_call.1} parent=0
    #allocation2 [shape = 'u8[4096]{0}', space=vmem, size = 0x1000, scoped, tag = 'input window, operand 0, single buffered']
    #allocation3 [shape = 's32[1]{0}', space=sflag, size = 0x4, scoped, tag = 'scoped memory for tpu_custom_call.1']
    #allocation4 [shape = 's32[1]{0}', space=sflag, size = 0x4, scoped, tag = 'scoped memory for tpu_custom_call.1']
    #allocation5 [shape = 'u8[4096]{0}', space=vmem, size = 0x1000, scoped, tag = 'input window, operand 1, single buffered']
    #allocation6 [shape = 's32[1]{0}', space=sflag, size = 0x4, scoped, tag = 'scoped memory for tpu_custom_call.1']
    #allocation7 [shape = 'u8[32768]{0}', space=vmem, size = 0x8000, scoped, tag = 'input window, operand 2, single buffered']
    #allocation8 [shape = 'u8[32768]{0}', space=vmem, size = 0x8000, scoped, tag = 'input window, operand 4, single buffered']
    #allocation9 [shape = 's32[1]{0}', space=sflag, size = 0x4, scoped, tag = 'scoped memory for tpu_custom_call.1']
    #allocation10 [shape = 'u8[4096]{0}', space=vmem, size = 0x1000, scoped, tag = 'output window, operand 0, single buffered']
    #allocation11 [shape = 'u8[4096]{0}', space=vmem, size = 0x1000, scoped, tag = 'output window, operand 1, single buffered']
    #allocation12 [shape = 's32[1]{0}', space=sflag, size = 0x4, scoped, tag = 'scoped memory for tpu_custom_call.1']
    %13 = vsyncpa [#allocation3], 0
    %14 = vsyncpa [#allocation6], 0
    %15 = vsyncpa [#allocation9], 0
    %16 = vsyncpa [#allocation4], 0
    %17 = vsyncpa [#allocation12], 0
    // Predicated region
    $region2: #{tpu_custom_call.1} parent=1 // pred_check
      _
    $region3: #{tpu_custom_call.1} parent=1 // pred_check_branch
      %19 = sbr.rel (0) target = $region5
    $region4: #{tpu_custom_call.1} parent=1 // pred_region
      %s21 = ssub.s32 128, 128
      %22 = vsyncadd [#allocation3], %s21
      %s24 = sshll.u32 [#allocation2], 4
      %s25 = int_to_ptr.vmem [resolvable:$true] %s24
      %27 = dma.hbm_to_vmem [thread:$0]  %s0, 128, %s25, [#allocation3]
    $region5: #{tpu_custom_call.1} parent=1 // pred_fallthru
      _
    // Predicated region
    $region6: #{tpu_custom_call.1} parent=1 // pred_check
      _
    $region7: #{tpu_custom_call.1} parent=1 // pred_check_branch
      %29 = sbr.rel (0) target = $region9
    $region8: #{tpu_custom_call.1} parent=1 // pred_region
      %s31 = ssub.s32 128, 128
      %32 = vsyncadd [#allocation6], %s31
      %s34 = sshll.u32 [#allocation5], 4
      %s35 = int_to_ptr.vmem [resolvable:$true] %s34
      %37 = dma.hbm_to_vmem [thread:$0]  %s1, 128, %s35, [#allocation6]
    $region9: #{tpu_custom_call.1} parent=1 // pred_fallthru
      _
    // Predicated region
    $region10: #{tpu_custom_call.1} parent=1 // pred_check
      _
    $region11: #{tpu_custom_call.1} parent=1 // pred_check_branch
      %39 = sbr.rel (0) target = $region13
    $region12: #{tpu_custom_call.1} parent=1 // pred_region
      %s41 = ssub.s32 1024, 1024
      %42 = vsyncadd [#allocation6], %s41
      %s43 = sshll.u32 [#allocation7], 4
      %s44 = int_to_ptr.vmem [resolvable:$true] %s43
      %49 = dma.hbm_to_vmem [thread:$0]  %s2, 1024, %s44, [#allocation6], 128, 128, 8
    $region13: #{tpu_custom_call.1} parent=1 // pred_fallthru
      _
    // Predicated region
    $region14: #{tpu_custom_call.1} parent=1 // pred_check
      _
    $region15: #{tpu_custom_call.1} parent=1 // pred_check_branch
      %51 = sbr.rel (0) target = $region17
    $region16: #{tpu_custom_call.1} parent=1 // pred_region
      _
    $region17: #{tpu_custom_call.1} parent=1 // pred_fallthru
      _
    // Predicated region
    $region18: #{tpu_custom_call.1} parent=1 // pred_check
      _
    $region19: #{tpu_custom_call.1} parent=1 // pred_check_branch
      %53 = sbr.rel (0) target = $region21
    $region20: #{tpu_custom_call.1} parent=1 // pred_region
      %s55 = ssub.s32 1024, 1024
      %56 = vsyncadd [#allocation9], %s55
      %s57 = sshll.u32 [#allocation8], 4
      %s58 = int_to_ptr.vmem [resolvable:$true] %s57
      %63 = dma.hbm_to_vmem [thread:$0]  %s4, 1024, %s58, [#allocation9], 128, 128, 8
    $region21: #{tpu_custom_call.1} parent=1 // pred_fallthru
      _
    // Predicated region
    $region22: #{tpu_custom_call.1} parent=1 // pred_check
      _
    $region23: #{tpu_custom_call.1} parent=1 // pred_check_branch
      %65 = sbr.rel (0) target = $region25
    $region24: #{tpu_custom_call.1} parent=1 // pred_region
      _
    $region25: #{tpu_custom_call.1} parent=1 // pred_fallthru
      _
    // Predicated region
    $region26: #{tpu_custom_call.1} parent=1 // pred_check
      _
    $region27: #{tpu_custom_call.1} parent=1 // pred_check_branch
      %67 = sbr.rel (0) target = $region29
    $region28: #{tpu_custom_call.1} parent=1 // pred_region
      %68 = dma.done [#allocation3], 128
    $region29: #{tpu_custom_call.1} parent=1 // pred_fallthru
      _
    // Predicated region
    $region30: #{tpu_custom_call.1} parent=1 // pred_check
      _
    $region31: #{tpu_custom_call.1} parent=1 // pred_check_branch
      %70 = sbr.rel (0) target = $region33
    $region32: #{tpu_custom_call.1} parent=1 // pred_region
      %71 = dma.done [#allocation6], 128
    $region33: #{tpu_custom_call.1} parent=1 // pred_fallthru
      _
    // Predicated region
    $region34: #{tpu_custom_call.1} parent=1 // pred_check
      _
    $region35: #{tpu_custom_call.1} parent=1 // pred_check_branch
      %73 = sbr.rel (0) target = $region37
    $region36: #{tpu_custom_call.1} parent=1 // pred_region
      %74 = dma.done [#allocation6], 1024
    $region37: #{tpu_custom_call.1} parent=1 // pred_fallthru
      _
    // Predicated region
    $region38: #{tpu_custom_call.1} parent=1 // pred_check
      _
    $region39: #{tpu_custom_call.1} parent=1 // pred_check_branch
      %76 = sbr.rel (0) target = $region41
    $region40: #{tpu_custom_call.1} parent=1 // pred_region
      %77 = dma.done [#allocation9], 1024
    $region41: #{tpu_custom_call.1} parent=1 // pred_fallthru
      _
    %v78 = vld [vmem:[#allocation2] sm:$0xff]
    %v79 = vld [vmem:[#allocation7] sm:$0xff]
    %v80 = vld [vmem:[#allocation7 + $0x8] sm:$0xff]
    %v81 = vld [vmem:[#allocation7 + $0x10] sm:$0xff]
    %v82 = vld [vmem:[#allocation7 + $0x18] sm:$0xff]
    %v83 = vld [vmem:[#allocation7 + $0x20] sm:$0xff]
    %v84 = vld [vmem:[#allocation7 + $0x28] sm:$0xff]
    %v85 = vld [vmem:[#allocation7 + $0x30] sm:$0xff]
    %v86 = vld [vmem:[#allocation7 + $0x38] sm:$0xff]
    %v87 = vld [vmem:[%s3] sm:$0x1]
    %v89 = vlaneseq
    %v90 = vshrl.u32 %v89, 7
    %v91 = vsub.s32 0, %v90
    %v92 = vrot.slane %v87, %v91
    %vm94 = vcmask 523264
    %v96 = vsel %vm94, %v78, 0
    %98 = vmatprep.subr.mxu0 0.0
    %99 = vmatpush1.msra.mxu0 %v79
    %100 = vmatprep.subr.mxu0 0.0
    %101 = vmatpush1.msra.mxu0 %v80
    %102 = vmatprep.subr.mxu0 0.0
    %103 = vmatpush1.msra.mxu0 %v81
    %104 = vmatprep.subr.mxu0 0.0
    %105 = vmatpush1.msra.mxu0 %v82
    %106 = vmatprep.subr.mxu0 0.0
    %107 = vmatpush1.msra.mxu0 %v83
    %108 = vmatprep.subr.mxu0 0.0
    %109 = vmatpush1.msra.mxu0 %v84
    %110 = vmatprep.subr.mxu0 0.0
    %111 = vmatpush1.msra.mxu0 %v85
    %112 = vmatprep.subr.mxu0 0.0
    %113 = vmatpush1.msra.mxu0 %v86
    %114 = vmatprep.subr.mxu0 0.0
    %115 = vmatpush1.msra.mxu0 0.0
    %116 = vmatprep.subr.mxu0 0.0
    %117 = vmatpush1.msra.mxu0 0.0
    %118 = vmatprep.subr.mxu0 0.0
    %119 = vmatpush1.msra.mxu0 0.0
    %120 = vmatprep.subr.mxu0 0.0
    %121 = vmatpush1.msra.mxu0 0.0
    %122 = vmatprep.subr.mxu0 0.0
    %123 = vmatpush1.msra.mxu0 0.0
    %124 = vmatprep.subr.mxu0 0.0
    %125 = vmatpush1.msra.mxu0 0.0
    %126 = vmatprep.subr.mxu0 0.0
    %127 = vmatpush1.msra.mxu0 0.0
    %128 = vmatprep.subr.mxu0 0.0
    %129 = vmatpush1.msra.mxu0 0.0
    %130 = vmatprep.subr.mxu0 0.0
    %131 = vmatpush1.msra.mxu0 0.0
    %132 = vmatprep.subr.mxu0 0.0
    %133 = vmatpush1.msra.mxu0 0.0
    %134 = vmatprep.subr.mxu0 0.0
    %135 = vmatpush1.msra.mxu0 0.0
    %136 = vmatprep.subr.mxu0 0.0
    %137 = vmatpush1.msra.mxu0 0.0
    %138 = vmatprep.subr.mxu0 0.0
    %139 = vmatpush1.msra.mxu0 0.0
    %140 = vmatprep.subr.mxu0 0.0
    %141 = vmatpush1.msra.mxu0 0.0
    %142 = vmatprep.subr.mxu0 0.0
    %143 = vmatpush1.msra.mxu0 0.0
    %144 = vmatprep.subr.mxu0 0.0
    %145 = vmatpush1.msra.mxu0 0.0
    %146 = vmatprep.subr.mxu0 0.0
    %147 = vmatpush1.msra.mxu0 0.0
    %148 = vmatprep.subr.mxu0 0.0
    %149 = vmatpush1.msra.mxu0 0.0
    %150 = vmatprep.subr.mxu0 0.0
    %151 = vmatpush1.msra.mxu0 0.0
    %152 = vmatprep.subr.mxu0 0.0
    %153 = vmatpush1.msra.mxu0 0.0
    %154 = vmatprep.subr.mxu0 0.0
    %155 = vmatpush1.msra.mxu0 0.0
    %156 = vmatprep.subr.mxu0 0.0
    %157 = vmatpush1.msra.mxu0 0.0
    %158 = vmatprep.subr.mxu0 0.0
    %159 = vmatpush1.msra.mxu0 0.0
    %160 = vmatprep.subr.mxu0 0.0
    %161 = vmatpush1.msra.mxu0 0.0
    %162 = vmatprep.mubr.f32.mxu0 0.0
    %163 = vmatmul.mubr.f32.gmra.mrb[0].mxu0 %v96
    %v164 = vpop.f32.mrb[0].mxu0
    %v165 = vadd.f32 %v92, %v164
    %v166 = vpop.f32.mrb[0].mxu0
    %167 = vdwg.mxu0
    %v168 = vmax.f32 %v165, 0.0
    %169 = vst [vmem:[#allocation10] sm:$0xff] %v168
    %v170 = vld [vmem:[#allocation5] sm:$0xff]
    %v171 = vld [vmem:[#allocation8] sm:$0xff]
    %v172 = vld [vmem:[#allocation8 + $0x8] sm:$0xff]
    %v173 = vld [vmem:[#allocation8 + $0x10] sm:$0xff]
    %v174 = vld [vmem:[#allocation8 + $0x18] sm:$0xff]
    %v175 = vld [vmem:[#allocation8 + $0x20] sm:$0xff]
    %v176 = vld [vmem:[#allocation8 + $0x28] sm:$0xff]
    %v177 = vld [vmem:[#allocation8 + $0x30] sm:$0xff]
    %v178 = vld [vmem:[#allocation8 + $0x38] sm:$0xff]
    %v179 = vld [vmem:[%s5] sm:$0x1]
    %v181 = vlaneseq
    %v182 = vshrl.u32 %v181, 7
    %v183 = vsub.s32 0, %v182
    %v184 = vrot.slane %v179, %v183
    %v187 = vsel %vm94, %v170, 0
    %189 = vmatprep.subr.mxu0 0.0
    %190 = vmatpush1.msra.mxu0 %v171
    %191 = vmatprep.subr.mxu0 0.0
    %192 = vmatpush1.msra.mxu0 %v172
    %193 = vmatprep.subr.mxu0 0.0
    %194 = vmatpush1.msra.mxu0 %v173
    %195 = vmatprep.subr.mxu0 0.0
    %196 = vmatpush1.msra.mxu0 %v174
    %197 = vmatprep.subr.mxu0 0.0
    %198 = vmatpush1.msra.mxu0 %v175
    %199 = vmatprep.subr.mxu0 0.0
    %200 = vmatpush1.msra.mxu0 %v176
    %201 = vmatprep.subr.mxu0 0.0
    %202 = vmatpush1.msra.mxu0 %v177
    %203 = vmatprep.subr.mxu0 0.0
    %204 = vmatpush1.msra.mxu0 %v178
    %205 = vmatprep.subr.mxu0 0.0
    %206 = vmatpush1.msra.mxu0 0.0
    %207 = vmatprep.subr.mxu0 0.0
    %208 = vmatpush1.msra.mxu0 0.0
    %209 = vmatprep.subr.mxu0 0.0
    %210 = vmatpush1.msra.mxu0 0.0
    %211 = vmatprep.subr.mxu0 0.0
    %212 = vmatpush1.msra.mxu0 0.0
    %213 = vmatprep.subr.mxu0 0.0
    %214 = vmatpush1.msra.mxu0 0.0
    %215 = vmatprep.subr.mxu0 0.0
    %216 = vmatpush1.msra.mxu0 0.0
    %217 = vmatprep.subr.mxu0 0.0
    %218 = vmatpush1.msra.mxu0 0.0
    %219 = vmatprep.subr.mxu0 0.0
    %220 = vmatpush1.msra.mxu0 0.0
    %221 = vmatprep.subr.mxu0 0.0
    %222 = vmatpush1.msra.mxu0 0.0
    %223 = vmatprep.subr.mxu0 0.0
    %224 = vmatpush1.msra.mxu0 0.0
    %225 = vmatprep.subr.mxu0 0.0
    %226 = vmatpush1.msra.mxu0 0.0
    %227 = vmatprep.subr.mxu0 0.0
    %228 = vmatpush1.msra.mxu0 0.0
    %229 = vmatprep.subr.mxu0 0.0
    %230 = vmatpush1.msra.mxu0 0.0
    %231 = vmatprep.subr.mxu0 0.0
    %232 = vmatpush1.msra.mxu0 0.0
    %233 = vmatprep.subr.mxu0 0.0
    %234 = vmatpush1.msra.mxu0 0.0
    %235 = vmatprep.subr.mxu0 0.0
    %236 = vmatpush1.msra.mxu0 0.0
    %237 = vmatprep.subr.mxu0 0.0
    %238 = vmatpush1.msra.mxu0 0.0
    %239 = vmatprep.subr.mxu0 0.0
    %240 = vmatpush1.msra.mxu0 0.0
    %241 = vmatprep.subr.mxu0 0.0
    %242 = vmatpush1.msra.mxu0 0.0
    %243 = vmatprep.subr.mxu0 0.0
    %244 = vmatpush1.msra.mxu0 0.0
    %245 = vmatprep.subr.mxu0 0.0
    %246 = vmatpush1.msra.mxu0 0.0
    %247 = vmatprep.subr.mxu0 0.0
    %248 = vmatpush1.msra.mxu0 0.0
    %249 = vmatprep.subr.mxu0 0.0
    %250 = vmatpush1.msra.mxu0 0.0
    %251 = vmatprep.subr.mxu0 0.0
    %252 = vmatpush1.msra.mxu0 0.0
    %253 = vmatprep.mubr.f32.mxu0 0.0
    %254 = vmatmul.mubr.f32.gmra.mrb[0].mxu0 %v187
    %v255 = vpop.f32.mrb[0].mxu0
    %v256 = vadd.f32 %v184, %v255
    %v257 = vpop.f32.mrb[0].mxu0
    %258 = vdwg.mxu0
    %v259 = vmax.f32 %v256, 0.0
    %260 = vst [vmem:[#allocation11] sm:$0xff] %v259
    // Predicated region
    $region42: #{tpu_custom_call.1} parent=1 // pred_check
      _
    $region43: #{tpu_custom_call.1} parent=1 // pred_check_branch
      %262 = sbr.rel (0) target = $region45
    $region44: #{tpu_custom_call.1} parent=1 // pred_region
      %s264 = ssub.s32 128, 128
      %265 = vsyncadd [#allocation4], %s264
      %s267 = sshll.u32 [#allocation10], 4
      %s268 = int_to_ptr.vmem [resolvable:$true] %s267
      %270 = dma.vmem_to_hbm [thread:$0]  %s268, 128, %s6, [#allocation4]
    $region45: #{tpu_custom_call.1} parent=1 // pred_fallthru
      _
    // Predicated region
    $region46: #{tpu_custom_call.1} parent=1 // pred_check
      _
    $region47: #{tpu_custom_call.1} parent=1 // pred_check_branch
      %272 = sbr.rel (0) target = $region49
    $region48: #{tpu_custom_call.1} parent=1 // pred_region
      %s274 = ssub.s32 128, 128
      %275 = vsyncadd [#allocation12], %s274
      %s277 = sshll.u32 [#allocation11], 4
      %s278 = int_to_ptr.vmem [resolvable:$true] %s277
      %280 = dma.vmem_to_hbm [thread:$0]  %s278, 128, %s7, [#allocation12]
    $region49: #{tpu_custom_call.1} parent=1 // pred_fallthru
      _
    // Predicated region
    $region50: #{tpu_custom_call.1} parent=1 // pred_check
      _
    $region51: #{tpu_custom_call.1} parent=1 // pred_check_branch
      %282 = sbr.rel (0) target = $region53
    $region52: #{tpu_custom_call.1} parent=1 // pred_region
      %283 = dma.done [#allocation4], 128
    $region53: #{tpu_custom_call.1} parent=1 // pred_fallthru
      _
    // Predicated region
    $region54: #{tpu_custom_call.1} parent=1 // pred_check
      _
    $region55: #{tpu_custom_call.1} parent=1 // pred_check_branch
      %285 = sbr.rel (0) target = $region57
    $region56: #{tpu_custom_call.1} parent=1 // pred_region
      %286 = dma.done [#allocation12], 128
    $region57: #{tpu_custom_call.1} parent=1 // pred_fallthru
      _
    %287 = vsyncpa [#allocation3], 1
    %288 = vsyncpa [#allocation6], 1
    %289 = vsyncpa [#allocation9], 1
    %290 = vsyncpa [#allocation4], 1
    %291 = vsyncpa [#allocation12], 1

</llo_original>
